<compile_context>
chip_gen: v7x
topology: tpu7x:2x2x1
jax: 0.10.0
libtpu: 0.0.40
codegen_flags: <defaults>
</compile_context>

<pallas_src>
import functools

import jax
import jax.numpy as jnp
from jax import lax
from jax.experimental import pallas as pl
from jax.experimental.pallas import tpu as pltpu

EPS = 1e-5


def _round_down(v, m):
    return (v // m) * m


def _tpu_vmem_and_cores():
    """(physical per-core VMEM bytes, TensorCores per device) from device kind."""
    try:
        kind = jax.devices()[0].device_kind.lower()
    except Exception:  # pragma: no cover - defensive
        kind = ""
    if "v7" in kind:
        return 64 * 2**20, 2
    if "v6" in kind or "v5e" in kind or "v5 lite" in kind or "v5litepod" in kind:
        return 128 * 2**20, 1
    # Unknown / older generation: stay conservative.
    return 32 * 2**20, 1


def _choose_cblk(N, C, HW, itemsize, budget_bytes, align, n_cores):
    """Largest align-rounded channel block whose pipeline footprint fits the
    budget.  Returns None when even `align` channels do not fit (the caller
    then uses the two-pass split-HW path instead of emitting an un-compilable
    tiling)."""
    # 2x double-buffered input + 2x output blocks + ~2 block-sized f32
    # temporaries (upcast x / x*x / pre-cast result).
    bytes_per_channel = N * HW * (4 * itemsize + 2 * 4)
    max_ch = budget_bytes // bytes_per_channel
    if max_ch >= C:
        cblk = C
    elif max_ch < align:
        return None
    else:
        cblk = _round_down(max_ch, align)
        # Prefer an exact divisor of C only when it is close (>=75%) to the
        # budgeted block; never collapse to tiny blocks on awkward C.
        d = cblk
        while d >= align and C % d != 0:
            d -= align
        if d >= align and C % d == 0 and d >= (3 * cblk) // 4:
            cblk = d
    # Megacore (v7x): make sure the "parallel" channel axis has >= 2 grid
    # steps so both TensorCores pull on HBM.
    if n_cores >= 2 and C >= 2 * align and cblk >= C:
        cblk = max(align, _round_down(pl.cdiv(C, 2), align))
    return cblk


# ----------------------------------------------------------------------------
# Fast path: fused stats + normalize + conditional affine, channel-blocked.
# ----------------------------------------------------------------------------
def _fused_kernel(x_ref, g_ref, b_ref, o_ref, *, cblk, align, inv_count):
    # x_ref: (N, cblk, HW)   g_ref/b_ref: (N, C_pad, 1) resident   o_ref: like x
    c0 = pl.program_id(0) * cblk
    if cblk % align == 0:
        c0 = pl.multiple_of(c0, align)

    x = x_ref[...].astype(jnp.float32)                     # (N, cblk, HW)

    # Single-pass per-channel batch statistics over (N, HW); channel axis
    # (sublanes) kept.  Sum / sum-of-squares avoids a block-sized `diff`
    # temporary; the E[x^2]-mean^2 cancellation is acceptable in f32 for BN
    # (clamped at 0 below).  Lane-axis reduction runs on the XLU.
    s1 = jnp.sum(x, axis=(0, 2), keepdims=True)            # (1, cblk, 1)
    s2 = jnp.sum(x * x, axis=(0, 2), keepdims=True)        # (1, cblk, 1)
    mean = s1 * inv_count
    var = jnp.maximum(s2 * inv_count - mean * mean, 0.0)
    inv_std = lax.rsqrt(var + EPS)

    # Fold the conditional affine into one per-(sample, channel) scale/shift:
    #   out = gamma*(x - mean)*inv_std + beta = x*scale + shift
    g = g_ref[:, pl.ds(c0, cblk), :]                       # (N, cblk, 1)
    b = b_ref[:, pl.ds(c0, cblk), :]                       # (N, cblk, 1)
    scale = g * inv_std
    shift = b - g * (mean * inv_std)

    o_ref[...] = (x * scale + shift).astype(o_ref.dtype)


def _fused_path(x_flat, gamma, beta, cblk, align, vmem_phys):
    N, C, HW = x_flat.shape
    itemsize = jnp.dtype(x_flat.dtype).itemsize
    n_blocks = pl.cdiv(C, cblk)
    c_pad = n_blocks * cblk

    # Pad gamma/beta (tiny) so the in-kernel pl.ds slice never goes OOB on a
    # partial channel block; padded channels get scale=shift=0.
    pad = c_pad - C
    gamma_p = jnp.pad(gamma, ((0, 0), (0, pad)))[:, :, None]   # (N, C_pad, 1)
    beta_p = jnp.pad(beta, ((0, 0), (0, pad)))[:, :, None]

    # Explicit scoped-VMEM limit ~1.35x the pipeline footprint (2x in + 2x out
    # double-buffered blocks + ~2 f32 temporaries + resident gamma/beta).
    footprint = N * cblk * HW * (4 * itemsize + 2 * 4) + 2 * N * c_pad * 4
    vmem_limit = min(int(0.96 * vmem_phys),
                     max(32 * 2**20, int(1.35 * footprint) + (2 << 20)))

    kernel = functools.partial(_fused_kernel, cblk=cblk, align=align,
                               inv_count=1.0 / float(N * HW))
    cost = pl.CostEstimate(
        flops=int(7 * N * C * HW),
        transcendentals=int(C),
        bytes_accessed=int(2 * N * C * HW * itemsize + 8 * N * C),
    )

    return pl.pallas_call(
        kernel,
        out_shape=jax.ShapeDtypeStruct((N, C, HW), x_flat.dtype),
        grid_spec=pltpu.PrefetchScalarGridSpec(
            num_scalar_prefetch=0,
            grid=(n_blocks,),
            in_specs=[
                pl.BlockSpec((N, cblk, HW), lambda c: (0, c, 0)),
                pl.BlockSpec((N, c_pad, 1), lambda c: (0, 0, 0)),   # resident
                pl.BlockSpec((N, c_pad, 1), lambda c: (0, 0, 0)),   # resident
            ],
            out_specs=pl.BlockSpec((N, cblk, HW), lambda c: (0, c, 0)),
        ),
        compiler_params=pltpu.CompilerParams(
            dimension_semantics=("parallel",),
            vmem_limit_bytes=vmem_limit,
        ),
        cost_estimate=cost,
    )(x_flat, gamma_p, beta_p)


# ----------------------------------------------------------------------------
# Fallback path: split-HW two-pass (stats kernel + apply kernel).
# ----------------------------------------------------------------------------
def _stats_kernel(x_ref, mean_ref, var_ref, sum_sc, ssq_sc, *,
                  hw_blk, hw_total, inv_count):
    # x_ref: (N, cblk, hw_blk); mean_ref/var_ref: (1, cblk, 1) outputs.
    h = pl.program_id(1)

    @pl.when(h == 0)
    def _():
        sum_sc[...] = jnp.zeros_like(sum_sc)
        ssq_sc[...] = jnp.zeros_like(ssq_sc)

    x = x_ref[...].astype(jnp.float32)
    # Mask the HW tail of a partial block so padded lanes don't pollute stats.
    hw_idx = h * hw_blk + lax.broadcasted_iota(jnp.int32, x.shape, 2)
    x = jnp.where(hw_idx < hw_total, x, 0.0)

    sum_sc[...] += jnp.sum(x, axis=(0, 2), keepdims=True)
    ssq_sc[...] += jnp.sum(x * x, axis=(0, 2), keepdims=True)

    @pl.when(h == pl.num_programs(1) - 1)
    def _():
        mean = sum_sc[...] * inv_count
        var = jnp.maximum(ssq_sc[...] * inv_count - mean * mean, 0.0)
        mean_ref[...] = mean
        var_ref[...] = var


def _apply_kernel(x_ref, s_ref, t_ref, o_ref):
    # Pure elementwise: out = x*scale + shift (per-(n, c) scale/shift).
    o_ref[...] = (x_ref[...].astype(jnp.float32) * s_ref[...]
                  + t_ref[...]).astype(o_ref.dtype)


def _two_pass_path(x_flat, gamma, beta, vmem_phys, align, budget_bytes):
    N, C, HW = x_flat.shape
    itemsize = jnp.dtype(x_flat.dtype).itemsize

    cblk = C if C <= align else align
    # HW block: 2x in + 2x out double-buffered blocks + ~2 f32 temporaries.
    bytes_per_hw = N * cblk * (4 * itemsize + 2 * 4)
    hw_blk = budget_bytes // bytes_per_hw
    if hw_blk >= HW:
        hw_blk = HW
    else:
        # Lane-dense blocks (multiple of 128); never silently fail to emit a
        # tiling — if 128 exceeds the budget we raise vmem_limit instead.
        hw_blk = max(128, _round_down(hw_blk, 128))

    c_steps = pl.cdiv(C, cblk)
    hw_steps = pl.cdiv(HW, hw_blk)

    footprint = N * cblk * hw_blk * (4 * itemsize + 2 * 4) + 8 * N * cblk * 4
    vmem_limit = min(int(0.96 * vmem_phys),
                     max(32 * 2**20, int(1.35 * footprint) + (2 << 20)))

    # Pass 1: per-channel mean / biased variance (accumulate over HW blocks).
    mean_o, var_o = pl.pallas_call(
        functools.partial(_stats_kernel, hw_blk=hw_blk, hw_total=HW,
                          inv_count=1.0 / float(N * HW)),
        out_shape=(jax.ShapeDtypeStruct((1, C, 1), jnp.float32),
                   jax.ShapeDtypeStruct((1, C, 1), jnp.float32)),
        grid_spec=pltpu.PrefetchScalarGridSpec(
            num_scalar_prefetch=0,
            grid=(c_steps, hw_steps),
            in_specs=[pl.BlockSpec((N, cblk, hw_blk), lambda c, h: (0, c, h))],
            out_specs=[pl.BlockSpec((1, cblk, 1), lambda c, h: (0, c, 0)),
                       pl.BlockSpec((1, cblk, 1), lambda c, h: (0, c, 0))],
            scratch_shapes=[pltpu.VMEM((1, cblk, 1), jnp.float32),
                            pltpu.VMEM((1, cblk, 1), jnp.float32)],
        ),
        compiler_params=pltpu.CompilerParams(
            dimension_semantics=("parallel", "arbitrary"),
            vmem_limit_bytes=vmem_limit,
        ),
    )(x_flat)

    # Fold stats + conditional affine into per-(n, c) scale/shift (tiny math).
    mean = mean_o[0, :, 0]                       # (C,)
    inv_std = lax.rsqrt(var_o[0, :, 0] + EPS)    # (C,)
    scale = gamma * inv_std[None, :]             # (N, C)
    shift = beta - scale * mean[None, :]         # (N, C)
    scale = scale[:, :, None]
    shift = shift[:, :, None]

    # Pass 2: elementwise apply, fully parallel grid.
    return pl.pallas_call(
        _apply_kernel,
        out_shape=jax.ShapeDtypeStruct((N, C, HW), x_flat.dtype),
        grid_spec=pltpu.PrefetchScalarGridSpec(
            num_scalar_prefetch=0,
            grid=(c_steps, hw_steps),
            in_specs=[pl.BlockSpec((N, cblk, hw_blk), lambda c, h: (0, c, h)),
                      pl.BlockSpec((N, cblk, 1), lambda c, h: (0, c, 0)),
                      pl.BlockSpec((N, cblk, 1), lambda c, h: (0, c, 0))],
            out_specs=pl.BlockSpec((N, cblk, hw_blk), lambda c, h: (0, c, h)),
        ),
        compiler_params=pltpu.CompilerParams(
            dimension_semantics=("parallel", "parallel"),
            vmem_limit_bytes=vmem_limit,
        ),
    )(x_flat, scale, shift)


# ----------------------------------------------------------------------------
# Public wrapper.
# ----------------------------------------------------------------------------
@functools.partial(jax.jit, static_argnames=("num_ch", "vmem_budget_override"))
def condition_batchnorm2d(x, y, embed_weight, num_ch, vmem_budget_override=None):
    """x: (N, C, H, W), y: (N,) int32, embed_weight: (num_classes, 2*C)."""
    N, C, H, W = x.shape
    assert C == num_ch
    HW = H * W
    itemsize = jnp.dtype(x.dtype).itemsize
    # Sublane packing alignment: f32 -> 8, bf16 -> 16, int8/fp8 -> 32.
    align = max(8, 32 // itemsize)

    # Glue (plain JAX): embedding lookup + chunk.  The NCHW -> (N, C, HW)
    # reshape is contiguous and free.
    gb = embed_weight[y].astype(jnp.float32)    # (N, 2C)
    gamma = gb[:, :C]                           # (N, C)
    beta = gb[:, C:]                            # (N, C)
    x_flat = x.reshape(N, C, HW)

    vmem_phys, n_cores = _tpu_vmem_and_cores()
    budget = (int(vmem_budget_override) if vmem_budget_override is not None
              else int(0.70 * vmem_phys))

    cblk = _choose_cblk(N, C, HW, itemsize, budget, align, n_cores)
    if cblk is None:
        out = _two_pass_path(x_flat, gamma, beta, vmem_phys, align, budget)
    else:
        out = _fused_path(x_flat, gamma, beta, cblk, align, vmem_phys)

    return out.reshape(N, C, H, W)


def _reference(x, y, embed_weight):
    """Pure-JAX reference matching PyTorch training-mode conditional BN."""
    N, C, H, W = x.shape
    mean = jnp.mean(x, axis=(0, 2, 3), keepdims=True)
    var = jnp.mean((x - mean) ** 2, axis=(0, 2, 3), keepdims=True)
    x_bn = (x - mean) / jnp.sqrt(var + EPS)
    gb = embed_weight[y]
    gamma = gb[:, :C].reshape(N, C, 1, 1)
    beta = gb[:, C:].reshape(N, C, 1, 1)
    return gamma * x_bn + beta


if __name__ == "__main__":
    num_classes = 10
    num_ch = 4
    N, H, W = 2, 16, 16

    key = jax.random.PRNGKey(0)
    kx, ky, ke = jax.random.split(key, 3)

    x = jax.random.normal(kx, (N, num_ch, H, W), dtype=jnp.float32)
    y = jax.random.randint(ky, (N,), 0, num_classes, dtype=jnp.int32)

    # Embedding init: first num_ch columns ~ Normal(1, 0.2), last num_ch zero.
    gamma_init = 1.0 + 0.2 * jax.random.normal(
        ke, (num_classes, num_ch), dtype=jnp.float32)
    beta_init = jnp.zeros((num_classes, num_ch), dtype=jnp.float32)
    embed_weight = jnp.concatenate([gamma_init, beta_init], axis=1)

    # Fast (fused single-read) path.
    out = condition_batchnorm2d(x, y, embed_weight, num_ch)
    out = jax.block_until_ready(out)
    ref = _reference(x, y, embed_weight)
    assert out.shape == (N, num_ch, H, W)
    assert jnp.allclose(out, ref, atol=1e-4, rtol=1e-4)

    # Two-pass split-HW fallback, forced via a tiny VMEM budget and a
    # non-multiple-of-128 spatial size (exercises HW blocking + tail masking).
    H2 = W2 = 13
    x2 = jax.random.normal(kx, (N, num_ch, H2, W2), dtype=jnp.float32)
    out2 = condition_batchnorm2d(x2, y, embed_weight, num_ch,
                                 vmem_budget_override=16 * 1024)
    out2 = jax.block_until_ready(out2)
    ref2 = _reference(x2, y, embed_weight)
    assert out2.shape == (N, num_ch, H2, W2)
    assert jnp.allclose(out2, ref2, atol=1e-4, rtol=1e-4)

    print("KERNEL_OK")
</pallas_src>

<mosaic_0001>
module attributes {stable_mosaic.version = 11 : i64} {
  func.func @_fused_kernel(%arg0: i32, %arg1: memref<2x4x256xf32, #tpu.memory_space<vmem>>, %arg2: memref<2x4x1xf32, #tpu.memory_space<vmem>>, %arg3: memref<2x4x1xf32, #tpu.memory_space<vmem>>, %arg4: memref<2x4x256xf32, #tpu.memory_space<vmem>>) attributes {dimension_semantics = [#tpu.dimension_semantics<parallel>], iteration_bounds = array<i64: 1>, scalar_prefetch = 0 : i64, scratch_operands = 0 : i64, tpu.core_type = #tpu.core_type<tc>, window_params = [{transform_indices = @transform_0, window_bounds = array<i64: 2, 4, 256>}, {pipeline_mode = #tpu.pipeline_mode<synchronous>, transform_indices = @transform_1, window_bounds = array<i64: 2, 4, 1>}, {pipeline_mode = #tpu.pipeline_mode<synchronous>, transform_indices = @transform_2, window_bounds = array<i64: 2, 4, 1>}, {transform_indices = @transform_3, window_bounds = array<i64: 2, 4, 256>}]} {
    %c4_i32 = arith.constant 4 : i32
    %0 = arith.muli %arg0, %c4_i32 : i32
    %c0 = arith.constant 0 : index
    %c0_0 = arith.constant 0 : index
    %c0_1 = arith.constant 0 : index
    %1 = vector.load %arg1[%c0, %c0_0, %c0_1] : memref<2x4x256xf32, #tpu.memory_space<vmem>>, vector<2x4x256xf32>
    %cst = arith.constant dense<0.000000e+00> : vector<4xf32>
    %2 = vector.multi_reduction <add>, %1, %cst [0, 2] : vector<2x4x256xf32> to vector<4xf32>
    %3 = vector.shape_cast %2 : vector<4xf32> to vector<1x4x1xf32>
    %4 = arith.mulf %1, %1 : vector<2x4x256xf32>
    %cst_2 = arith.constant dense<0.000000e+00> : vector<4xf32>
    %5 = vector.multi_reduction <add>, %4, %cst_2 [0, 2] : vector<2x4x256xf32> to vector<4xf32>
    %6 = vector.shape_cast %5 : vector<4xf32> to vector<1x4x1xf32>
    %cst_3 = arith.constant 0.001953125 : f32
    %7 = vector.broadcast %cst_3 : f32 to vector<1x4x1xf32>
    %8 = arith.mulf %3, %7 : vector<1x4x1xf32>
    %cst_4 = arith.constant 0.001953125 : f32
    %9 = vector.broadcast %cst_4 : f32 to vector<1x4x1xf32>
    %10 = arith.mulf %6, %9 : vector<1x4x1xf32>
    %11 = arith.mulf %8, %8 : vector<1x4x1xf32>
    %12 = arith.subf %10, %11 : vector<1x4x1xf32>
    %cst_5 = arith.constant 0.000000e+00 : f32
    %13 = vector.broadcast %cst_5 : f32 to vector<1x4x1xf32>
    %14 = arith.maximumf %12, %13 : vector<1x4x1xf32>
    %cst_6 = arith.constant 9.99999974E-6 : f32
    %15 = vector.broadcast %cst_6 : f32 to vector<1x4x1xf32>
    %16 = arith.addf %14, %15 : vector<1x4x1xf32>
    %17 = math.rsqrt %16 : vector<1x4x1xf32>
    %c0_7 = arith.constant 0 : index
    %18 = arith.index_cast %0 : i32 to index
    %c0_8 = arith.constant 0 : index
    %19 = vector.load %arg2[%c0_7, %18, %c0_8] : memref<2x4x1xf32, #tpu.memory_space<vmem>>, vector<2x4x1xf32>
    %c0_9 = arith.constant 0 : index
    %20 = arith.index_cast %0 : i32 to index
    %c0_10 = arith.constant 0 : index
    %21 = vector.load %arg3[%c0_9, %20, %c0_10] : memref<2x4x1xf32, #tpu.memory_space<vmem>>, vector<2x4x1xf32>
    %22 = vector.broadcast %17 : vector<1x4x1xf32> to vector<2x4x1xf32>
    %23 = arith.mulf %19, %22 : vector<2x4x1xf32>
    %24 = arith.mulf %8, %17 : vector<1x4x1xf32>
    %25 = vector.broadcast %24 : vector<1x4x1xf32> to vector<2x4x1xf32>
    %26 = arith.mulf %19, %25 : vector<2x4x1xf32>
    %27 = arith.subf %21, %26 : vector<2x4x1xf32>
    %28 = vector.broadcast %23 : vector<2x4x1xf32> to vector<2x4x256xf32>
    %29 = arith.mulf %1, %28 : vector<2x4x256xf32>
    %30 = vector.broadcast %27 : vector<2x4x1xf32> to vector<2x4x256xf32>
    %31 = arith.addf %29, %30 : vector<2x4x256xf32>
    %c0_11 = arith.constant 0 : index
    %c0_12 = arith.constant 0 : index
    %c0_13 = arith.constant 0 : index
    %32 = vector.load %arg4[%c0_11, %c0_12, %c0_13] : memref<2x4x256xf32, #tpu.memory_space<vmem>>, vector<2x4x256xf32>
    tpu.vector_store %arg4[%c0_11, %c0_12, %c0_13], %31 {strides = array<i32>} : memref<2x4x256xf32, #tpu.memory_space<vmem>>, vector<2x4x256xf32>,
    return
  }
  func.func @transform_0(%arg0: i32) -> (i32, i32, i32) {
    %c0_i32 = arith.constant 0 : i32
    %c0_i32_0 = arith.constant 0 : i32
    %c0_i32_1 = arith.constant 0 : i32
    return %c0_i32, %arg0, %c0_i32_0 : i32, i32, i32
  }
  func.func @transform_1(%arg0: i32) -> (i32, i32, i32) {
    %c0_i32 = arith.constant 0 : i32
    %c0_i32_0 = arith.constant 0 : i32
    %c0_i32_1 = arith.constant 0 : i32
    %c0_i32_2 = arith.constant 0 : i32
    return %c0_i32, %c0_i32_0, %c0_i32_1 : i32, i32, i32
  }
  func.func @transform_2(%arg0: i32) -> (i32, i32, i32) {
    %c0_i32 = arith.constant 0 : i32
    %c0_i32_0 = arith.constant 0 : i32
    %c0_i32_1 = arith.constant 0 : i32
    %c0_i32_2 = arith.constant 0 : i32
    return %c0_i32, %c0_i32_0, %c0_i32_1 : i32, i32, i32
  }
  func.func @transform_3(%arg0: i32) -> (i32, i32, i32) {
    %c0_i32 = arith.constant 0 : i32
    %c0_i32_0 = arith.constant 0 : i32
    %c0_i32_1 = arith.constant 0 : i32
    return %c0_i32, %arg0, %c0_i32_0 : i32, i32, i32
  }
}

</mosaic_0001>

<llo_original>
// kernel: condition_batchnorm2d.1
$region0: #{condition_batchnorm2d.1}
  #allocation0 [shape = 'u32[]', space=smem, size = 0x4, offset = 0x4, fixed_abs, tag = 'smem constant byte address 0x4 - core index']
  #allocation1 [shape = 'u32[144,128]{1,0:T(1,128)}', space=vmem, size = 0x12000, scoped, tag = 'internal scratch']
  %s0 = inlined_call_operand.vmem [shape: f32[2,4,256], index: 0, kind: input, shape index: {}]
  %s1 = inlined_call_operand.vmem [shape: f32[2,4,1], index: 1, kind: input, shape index: {}]
  %s2 = inlined_call_operand.vmem [shape: f32[2,4,1], index: 2, kind: input, shape index: {}]
  %s3 = inlined_call_operand.vmem [shape: f32[2,4,256], index: 3, kind: output, shape index: {}]
  %s4 = sld [smem:[#allocation0]]
  $region22: #{condition_batchnorm2d.1} parent=0
    _
  %s6 = ssub.s32 1, %s4
  %s7 = scalar_select 0, %s6, %s4
  // Predicated region
  $region2: #{condition_batchnorm2d.1} parent=0 // pred_check
    _
  $region3: #{condition_batchnorm2d.1} parent=0 // pred_check_branch
    %9 = sbr.rel (0) target = $region5
  $region4: #{condition_batchnorm2d.1} parent=0 // pred_region
    _
  $region5: #{condition_batchnorm2d.1} parent=0 // pred_fallthru
    _
  // Predicated region
  $region6: #{condition_batchnorm2d.1} parent=0 // pred_check
    _
  $region7: #{condition_batchnorm2d.1} parent=0 // pred_check_branch
    %11 = sbr.rel (0) target = $region9
  $region8: #{condition_batchnorm2d.1} parent=0 // pred_region
    _
  $region9: #{condition_batchnorm2d.1} parent=0 // pred_fallthru
    _
  // Predicated region
  $region10: #{condition_batchnorm2d.1} parent=0 // pred_check
    _
  $region11: #{condition_batchnorm2d.1} parent=0 // pred_check_branch
    %13 = sbr.rel (0) target = $region13
  $region12: #{condition_batchnorm2d.1} parent=0 // pred_region
    _
  $region13: #{condition_batchnorm2d.1} parent=0 // pred_fallthru
    _
  %s14 = smul.u32 0, 4
  %v15 = vld [vmem:[%s0] sm:$0xff]
  %v16 = vld [vmem:[%s0 + $0x8] sm:$0xff]
  %v19 = vcombine.high %v15, %v15
  %v20 = vcombine.high %v16, %v16
  %vm23 = vcmask 1043456
  %v24 = vsel %vm23, %v15, 0.0
  %v25 = vsel %vm23, %v19, 0.0
  %v26 = vadd.f32 %v24, %v25
  %v27 = vsel %vm23, %v16, 0.0
  %v28 = vadd.f32 %v26, %v27
  %v29 = vsel %vm23, %v20, 0.0
  %v30 = vadd.f32 %v28, %v29
  %31 = vadd.xlane.f32.xlu0 %v30
  %v32 = vpop.xlane.xlu0 %31
  %v33 = vmul.f32 %v15, %v15
  %v34 = vmul.f32 %v16, %v16
  %v37 = vcombine.high %v33, %v33
  %v38 = vcombine.high %v34, %v34
  %v41 = vsel %vm23, %v33, 0.0
  %v42 = vsel %vm23, %v37, 0.0
  %v43 = vadd.f32 %v41, %v42
  %v44 = vsel %vm23, %v34, 0.0
  %v45 = vadd.f32 %v43, %v44
  %v46 = vsel %vm23, %v38, 0.0
  %v47 = vadd.f32 %v45, %v46
  %48 = vadd.xlane.f32.xlu0 %v47
  %v49 = vpop.xlane.xlu0 %48
  %v50 = vmul.f32 %v32, 0.001953125
  %v51 = vmul.f32 %v49, 0.001953125
  %v52 = vmul.f32 %v50, %v50
  %v53 = vsub.f32 %v51, %v52
  %v54 = vmax.f32 %v53, 0.0
  %v55 = vadd.f32 %v54, 1e-05
  %v56 = vrsqrt.pop %v55
  %s57 = scalar_lea.vmem %s1, %s14
  %v58 = vld [vmem:[%s57] sm:$0xf]
  %v59 = vld [vmem:[%s57 + $0x4] sm:$0xf]
  %s60 = scalar_lea.vmem %s2, %s14
  %v61 = vld [vmem:[%s60] sm:$0xf]
  %v62 = vld [vmem:[%s60 + $0x4] sm:$0xf]
  %v63 = vmul.f32 %v58, %v56
  %v64 = vmul.f32 %v59, %v56
  %v65 = vmul.f32 %v50, %v56
  %v66 = vmul.f32 %v58, %v65
  %v67 = vmul.f32 %v59, %v65
  %v68 = vsub.f32 %v61, %v66
  %v69 = vsub.f32 %v62, %v67
  %71 = vset.pattern.permute.xlu0 0
  %72 = vperm.xlu0 %71, %v63
  %v73 = vpop.permute.xlu0 %72
  %75 = vset.pattern.permute.xlu0 0
  %76 = vperm.xlu0 %75, %v64
  %v77 = vpop.permute.xlu0 %76
  %v79 = vunpack.c.l.s4 839922192
  %v80 = vunpack.c.0.s8 %v79
  %v81 = vlaneseq
  %v82 = vshrl.u32 %v81, 7
  %v83 = vsub.s32 %v80, %v82
  %v84 = vrot.slane %v73, %v83
  %v86 = vunpack.c.l.s4 839922192
  %v87 = vunpack.c.0.s8 %v86
  %v88 = vlaneseq
  %v89 = vshrl.u32 %v88, 7
  %v90 = vsub.s32 %v87, %v89
  %v91 = vrot.slane %v77, %v90
  %v94 = vmul.f32 %v15, %v84
  %v95 = vmul.f32 %v16, %v91
  %97 = vset.pattern.permute.xlu0 0
  %98 = vperm.xlu0 %97, %v68
  %v99 = vpop.permute.xlu0 %98
  %101 = vset.pattern.permute.xlu0 0
  %102 = vperm.xlu0 %101, %v69
  %v103 = vpop.permute.xlu0 %102
  %v105 = vunpack.c.l.s4 839922192
  %v106 = vunpack.c.0.s8 %v105
  %v107 = vlaneseq
  %v108 = vshrl.u32 %v107, 7
  %v109 = vsub.s32 %v106, %v108
  %v110 = vrot.slane %v99, %v109
  %v112 = vunpack.c.l.s4 839922192
  %v113 = vunpack.c.0.s8 %v112
  %v114 = vlaneseq
  %v115 = vshrl.u32 %v114, 7
  %v116 = vsub.s32 %v113, %v115
  %v117 = vrot.slane %v103, %v116
  %v120 = vadd.f32 %v94, %v110
  %v121 = vadd.f32 %v95, %v117
  %122 = vst [vmem:[%s3] sm:$0xff] %v120
  %123 = vst [vmem:[%s3 + $0x8] sm:$0xff] %v121
  // Predicated region
  $region14: #{condition_batchnorm2d.1} parent=0 // pred_check
    _
  $region15: #{condition_batchnorm2d.1} parent=0 // pred_check_branch
    %125 = sbr.rel (0) target = $region17
  $region16: #{condition_batchnorm2d.1} parent=0 // pred_region
    _
  $region17: #{condition_batchnorm2d.1} parent=0 // pred_fallthru
    _
  // Predicated region
  $region18: #{condition_batchnorm2d.1} parent=0 // pred_check
    _
  $region19: #{condition_batchnorm2d.1} parent=0 // pred_check_branch
    %127 = sbr.rel (0) target = $region21
  $region20: #{condition_batchnorm2d.1} parent=0 // pred_region
    _
  $region21: #{condition_batchnorm2d.1} parent=0 // pred_fallthru
    _

</llo_original>
